<compile_context>
chip_gen: v6e
topology: v6e:2x2x1
jax: 0.10.0
libtpu: 0.0.40
codegen_flags: <defaults>
</compile_context>

<pallas_src>
import jax
import jax.numpy as jnp
from jax.experimental import pallas as pl
from jax.experimental.pallas import tpu as pltpu


LANES = 128
# 2048 rows x 128 lanes x 4 B = 1 MiB per output block (2 MiB double-buffered)
# + 1 MiB resident pattern: far under scoped-VMEM limits on v5e/v6e/v7x while
# big enough that per-grid-step overhead is negligible vs. the HBM write.
TILE_R = 2048


def _toy_kernel(params_ref, pattern_ref, out_ref):
    # params_ref : SMEM f32[6] = [w1, b1, w2, b2, w3, b3]
    # pattern_ref: VMEM f32[tile_r, 128], pattern[r, l] = r*128 + l
    #              (constant block index -> fetched once, stays resident)
    # out_ref    : VMEM f32[tile_r, 128]  (lane-dense slab of the flat index)
    tile_r, lanes = out_ref.shape

    # Scalar offset of this block in the flat arange; tile_r*lanes is a
    # multiple of 1024 so the f32 conversion is exact.
    base = (pl.program_id(0) * (tile_r * lanes)).astype(jnp.float32)

    w1 = params_ref[0]
    b1 = params_ref[1]
    w2 = params_ref[2]
    b2 = params_ref[3]
    w3 = params_ref[4]
    b3 = params_ref[5]

    x = pattern_ref[...] + base          # flat arange value per element
    h = jnp.maximum(x * w1 + b1, 0.0)    # first  + relu1
    h = jnp.maximum(h * w2 + b2, 0.0)    # second + relu2
    h = jnp.maximum(h * w3 + b3, 0.0)    # third  + relu3
    out_ref[...] = h


def toy_forward(n, params, tile_r=TILE_R, flat_output=False):
    """params: f32[6] = [w1, b1, w2, b2, w3, b3].

    Returns f32[n, 1] (PyTorch layout) by default, or the flat f32[n] vector
    when flat_output=True (avoids the lane-padded (n, 1) final buffer).
    """
    n = int(n)
    rows = -(-n // LANES)                                  # ceil(n / 128)
    # Clamp the tile for tiny inputs; keep sublane dim a multiple of 8.
    tile_r = max(8, min(int(tile_r), -(-rows // 8) * 8))
    num_tiles = max(1, -(-rows // tile_r))
    padded_rows = num_tiles * tile_r
    padded_n = padded_rows * LANES

    # In-tile index pattern, computed once outside the kernel and kept
    # resident in VMEM (block index is constant across the grid).
    pattern = jnp.arange(tile_r * LANES, dtype=jnp.float32).reshape(
        tile_r, LANES)

    cost = pl.CostEstimate(
        flops=9 * padded_n,                                 # 3x (mul+add+max)
        transcendentals=0,
        bytes_accessed=4 * (padded_n + tile_r * LANES) + 4 * 6,
    )

    out = pl.pallas_call(
        _toy_kernel,
        out_shape=jax.ShapeDtypeStruct((padded_rows, LANES), jnp.float32),
        grid=(num_tiles,),
        in_specs=[
            pl.BlockSpec(memory_space=pltpu.MemorySpace.SMEM),
            pl.BlockSpec((tile_r, LANES), lambda i: (0, 0)),
        ],
        out_specs=pl.BlockSpec((tile_r, LANES), lambda i: (i, 0)),
        compiler_params=pltpu.CompilerParams(
            dimension_semantics=("parallel",)),
        cost_estimate=cost,
    )(params, pattern)

    # Layout plumbing back to the PyTorch shape, minimized: slice only when
    # the last tile is actually partial; add the singleton dim only if asked.
    flat = out.reshape(-1)
    if padded_n != n:
        flat = flat[:n]
    if flat_output:
        return flat
    return flat[:, None]


def init_params(key):
    """Deterministic init mimicking nn.Linear(1,1) x3 (weight (1,1), bias (1,))."""
    ks = jax.random.split(key, 6)
    vals = [jax.random.uniform(k, (), jnp.float32, -1.0, 1.0) for k in ks]
    return jnp.stack(vals)  # [w1, b1, w2, b2, w3, b3]


def toy_ref(n, params):
    """Pure-JAX reference for correctness checking."""
    x = jnp.arange(n, dtype=jnp.float32)[:, None]
    w1, b1, w2, b2, w3, b3 = [params[i] for i in range(6)]
    h = jnp.maximum(x * w1 + b1, 0.0)
    h = jnp.maximum(h * w2 + b2, 0.0)
    h = jnp.maximum(h * w3 + b3, 0.0)
    return h


if __name__ == "__main__":
    key = jax.random.PRNGKey(0)
    pkey, dkey = jax.random.split(key)

    params = init_params(pkey)

    # The PyTorch forward only uses len(data[0]) (and a device); build a small
    # deterministic "data" tuple with seq=8 rows, 4 features.
    seq = 8
    data0 = jax.random.normal(dkey, (seq, 4), dtype=jnp.float32)
    data = (data0, (data0,))           # mirrors the (data[0], data[1][0]) access
    n = len(data[0])

    out = jax.block_until_ready(toy_forward(n, params))
    ref = toy_ref(n, params)
    assert out.shape == (seq, 1), out.shape
    assert jnp.allclose(out, ref, atol=1e-6, rtol=1e-6), (out, ref)

    # Multi-tile, non-multiple-of-128 size to exercise the grid, the resident
    # pattern across steps, and the tail slicing.
    n_big = TILE_R * LANES + TILE_R * LANES // 2 + 37   # 393253 -> 2 grid steps
    out_big = jax.block_until_ready(toy_forward(n_big, params))
    ref_big = toy_ref(n_big, params)
    assert out_big.shape == (n_big, 1), out_big.shape
    assert jnp.allclose(out_big, ref_big, atol=1e-5, rtol=1e-5)

    # Flat-output fast path (no (n,1) lane-padded final buffer).
    out_flat = jax.block_until_ready(toy_forward(n_big, params, flat_output=True))
    assert out_flat.shape == (n_big,)
    assert jnp.allclose(out_flat, ref_big[:, 0], atol=1e-5, rtol=1e-5)

    print("KERNEL_OK")
</pallas_src>

<mosaic_0001>
module attributes {stable_mosaic.version = 11 : i64} {
  func.func @_toy_kernel(%arg0: i32, %arg1: memref<6xf32, #tpu.memory_space<smem>>, %arg2: memref<8x128xf32, #tpu.memory_space<vmem>>, %arg3: memref<8x128xf32, #tpu.memory_space<vmem>>) attributes {dimension_semantics = [#tpu.dimension_semantics<parallel>], iteration_bounds = array<i64: 1>, scalar_prefetch = 0 : i64, scratch_operands = 0 : i64, tpu.core_type = #tpu.core_type<tc>, window_params = [{transform_indices = @transform_0, window_bounds = array<i64: 6>}, {pipeline_mode = #tpu.pipeline_mode<synchronous>, transform_indices = @transform_1, window_bounds = array<i64: 8, 128>}, {transform_indices = @transform_2, window_bounds = array<i64: 8, 128>}]} {
    %c1024_i32 = arith.constant 1024 : i32
    %0 = arith.muli %arg0, %c1024_i32 : i32
    %1 = arith.sitofp %0 : i32 to f32
    %c0 = arith.constant 0 : index
    %2 = memref.load %arg1[%c0] : memref<6xf32, #tpu.memory_space<smem>>
    %c1 = arith.constant 1 : index
    %3 = memref.load %arg1[%c1] : memref<6xf32, #tpu.memory_space<smem>>
    %c2 = arith.constant 2 : index
    %4 = memref.load %arg1[%c2] : memref<6xf32, #tpu.memory_space<smem>>
    %c3 = arith.constant 3 : index
    %5 = memref.load %arg1[%c3] : memref<6xf32, #tpu.memory_space<smem>>
    %c4 = arith.constant 4 : index
    %6 = memref.load %arg1[%c4] : memref<6xf32, #tpu.memory_space<smem>>
    %c5 = arith.constant 5 : index
    %7 = memref.load %arg1[%c5] : memref<6xf32, #tpu.memory_space<smem>>
    %c0_0 = arith.constant 0 : index
    %c0_1 = arith.constant 0 : index
    %8 = vector.load %arg2[%c0_0, %c0_1] : memref<8x128xf32, #tpu.memory_space<vmem>>, vector<8x128xf32>
    %9 = vector.broadcast %1 : f32 to vector<8x128xf32>
    %10 = arith.addf %8, %9 : vector<8x128xf32>
    %11 = vector.broadcast %2 : f32 to vector<8x128xf32>
    %12 = arith.mulf %10, %11 : vector<8x128xf32>
    %13 = vector.broadcast %3 : f32 to vector<8x128xf32>
    %14 = arith.addf %12, %13 : vector<8x128xf32>
    %cst = arith.constant 0.000000e+00 : f32
    %15 = vector.broadcast %cst : f32 to vector<8x128xf32>
    %16 = arith.maximumf %14, %15 : vector<8x128xf32>
    %17 = vector.broadcast %4 : f32 to vector<8x128xf32>
    %18 = arith.mulf %16, %17 : vector<8x128xf32>
    %19 = vector.broadcast %5 : f32 to vector<8x128xf32>
    %20 = arith.addf %18, %19 : vector<8x128xf32>
    %cst_2 = arith.constant 0.000000e+00 : f32
    %21 = vector.broadcast %cst_2 : f32 to vector<8x128xf32>
    %22 = arith.maximumf %20, %21 : vector<8x128xf32>
    %23 = vector.broadcast %6 : f32 to vector<8x128xf32>
    %24 = arith.mulf %22, %23 : vector<8x128xf32>
    %25 = vector.broadcast %7 : f32 to vector<8x128xf32>
    %26 = arith.addf %24, %25 : vector<8x128xf32>
    %cst_3 = arith.constant 0.000000e+00 : f32
    %27 = vector.broadcast %cst_3 : f32 to vector<8x128xf32>
    %28 = arith.maximumf %26, %27 : vector<8x128xf32>
    %c0_4 = arith.constant 0 : index
    %c0_5 = arith.constant 0 : index
    %29 = vector.load %arg3[%c0_4, %c0_5] : memref<8x128xf32, #tpu.memory_space<vmem>>, vector<8x128xf32>
    tpu.vector_store %arg3[%c0_4, %c0_5], %28 {strides = array<i32>} : memref<8x128xf32, #tpu.memory_space<vmem>>, vector<8x128xf32>,
    return
  }
  func.func @transform_0(%arg0: i32) -> i32 {
    %c0_i32 = arith.constant 0 : i32
    %c0_i32_0 = arith.constant 0 : i32
    return %c0_i32 : i32
  }
  func.func @transform_1(%arg0: i32) -> (i32, i32) {
    %c0_i32 = arith.constant 0 : i32
    %c0_i32_0 = arith.constant 0 : i32
    %c0_i32_1 = arith.constant 0 : i32
    return %c0_i32, %c0_i32_0 : i32, i32
  }
  func.func @transform_2(%arg0: i32) -> (i32, i32) {
    %c0_i32 = arith.constant 0 : i32
    %c0_i32_0 = arith.constant 0 : i32
    return %arg0, %c0_i32 : i32, i32
  }
}

</mosaic_0001>

<llo_original>
// kernel: tpu_custom_call.1
$region0: #{tpu_custom_call.1}
  #allocation0 [shape = 'u32[]', space=smem, size = 0x4, offset = 0x4, fixed_abs, tag = 'smem constant byte address 0x4 - core index']
  #allocation1 [shape = 'u32[144,128]{1,0:T(1,128)}', space=vmem, size = 0x12000, scoped, tag = 'internal scratch']
  %s0 = inlined_call_operand.hbm [shape: f32[6], index: 0, kind: input, shape index: {}]
  %s1 = inlined_call_operand.hbm [shape: f32[8,128], index: 1, kind: input, shape index: {}]
  %s2 = inlined_call_operand.hbm [shape: f32[8,128], index: 2, kind: output, shape index: {}]
  %s3 = sld [smem:[#allocation0]]
  $region26: #{tpu_custom_call.1} parent=0
    _
  %s5 = ssub.s32 1, %s3
  %s6 = scalar_select 0, %s5, %s3
  $region1: #{tpu_custom_call.1} parent=0
    #allocation2 [shape = 'u8[512]{0}', space=smem, size = 0x200, scoped, tag = 'input window, operand 0, single buffered']
    #allocation3 [shape = 's32[1]{0}', space=sflag, size = 0x4, scoped, tag = 'scoped memory for tpu_custom_call.1']
    #allocation4 [shape = 's32[1]{0}', space=sflag, size = 0x4, scoped, tag = 'scoped memory for tpu_custom_call.1']
    #allocation5 [shape = 's32[1]{0}', space=sflag, size = 0x4, scoped, tag = 'scoped memory for tpu_custom_call.1']
    #allocation6 [shape = 'u8[4096]{0}', space=vmem, size = 0x1000, scoped, tag = 'input window, operand 1, single buffered']
    #allocation7 [shape = 'u8[4096]{0}', space=vmem, size = 0x1000, scoped, tag = 'output window, operand 0, single buffered']
    %7 = vsyncpa [#allocation5], 0
    %8 = vsyncpa [#allocation3], 0
    %9 = vsyncpa [#allocation4], 0
    // Predicated region
    $region2: #{tpu_custom_call.1} parent=1 // pred_check
      _
    $region3: #{tpu_custom_call.1} parent=1 // pred_check_branch
      %11 = sbr.rel (0) target = $region5
    $region4: #{tpu_custom_call.1} parent=1 // pred_region
      %s13 = ssub.s32 16, 16
      %14 = vsyncadd [#allocation5], %s13
      %17 = dma.hbm_to_smem %s0, 16, [#allocation2], [#allocation5]
    $region5: #{tpu_custom_call.1} parent=1 // pred_fallthru
      _
    // Predicated region
    $region6: #{tpu_custom_call.1} parent=1 // pred_check
      _
    $region7: #{tpu_custom_call.1} parent=1 // pred_check_branch
      %19 = sbr.rel (0) target = $region9
    $region8: #{tpu_custom_call.1} parent=1 // pred_region
      %s21 = ssub.s32 128, 128
      %22 = vsyncadd [#allocation3], %s21
      %s24 = sshll.u32 [#allocation6], 4
      %s25 = int_to_ptr.vmem [resolvable:$true] %s24
      %27 = dma.hbm_to_vmem [thread:$0]  %s1, 128, %s25, [#allocation3]
    $region9: #{tpu_custom_call.1} parent=1 // pred_fallthru
      _
    // Predicated region
    $region10: #{tpu_custom_call.1} parent=1 // pred_check
      _
    $region11: #{tpu_custom_call.1} parent=1 // pred_check_branch
      %29 = sbr.rel (0) target = $region13
    $region12: #{tpu_custom_call.1} parent=1 // pred_region
      %30 = dma.done [#allocation5], 16
    $region13: #{tpu_custom_call.1} parent=1 // pred_fallthru
      _
    // Predicated region
    $region14: #{tpu_custom_call.1} parent=1 // pred_check
      _
    $region15: #{tpu_custom_call.1} parent=1 // pred_check_branch
      %32 = sbr.rel (0) target = $region17
    $region16: #{tpu_custom_call.1} parent=1 // pred_region
      %33 = dma.done [#allocation3], 128
    $region17: #{tpu_custom_call.1} parent=1 // pred_fallthru
      _
    %34 = sfence
    %s35 = smul.u32 0, 1024
    %s36 = scvt.s32.f32 %s35
    %s37 = sld [smem:[#allocation2]]
    %s38 = sld [smem:[#allocation2 + $0x1]]
    %s39 = sld [smem:[#allocation2 + $0x2]]
    %s40 = sld [smem:[#allocation2 + $0x3]]
    %s41 = sld [smem:[#allocation2 + $0x4]]
    %s42 = sld [smem:[#allocation2 + $0x5]]
    %v43 = vld [vmem:[#allocation6] sm:$0xff]
    %v44 = vstv %s36
    %v45 = vadd.f32 %v43, %v44
    %v46 = vstv %s37
    %v47 = vmul.f32 %v45, %v46
    %v48 = vstv %s38
    %v49 = vadd.f32 %v47, %v48
    %v50 = vmax.f32 %v49, 0.0
    %v51 = vstv %s39
    %v52 = vmul.f32 %v50, %v51
    %v53 = vstv %s40
    %v54 = vadd.f32 %v52, %v53
    %v55 = vmax.f32 %v54, 0.0
    %v56 = vstv %s41
    %v57 = vmul.f32 %v55, %v56
    %v58 = vstv %s42
    %v59 = vadd.f32 %v57, %v58
    %v60 = vmax.f32 %v59, 0.0
    %61 = vst [vmem:[#allocation7] sm:$0xff] %v60
    // Predicated region
    $region18: #{tpu_custom_call.1} parent=1 // pred_check
      _
    $region19: #{tpu_custom_call.1} parent=1 // pred_check_branch
      %63 = sbr.rel (0) target = $region21
    $region20: #{tpu_custom_call.1} parent=1 // pred_region
      %s65 = ssub.s32 128, 128
      %66 = vsyncadd [#allocation4], %s65
      %s68 = sshll.u32 [#allocation7], 4
      %s69 = int_to_ptr.vmem [resolvable:$true] %s68
      %71 = dma.vmem_to_hbm [thread:$0]  %s69, 128, %s2, [#allocation4]
    $region21: #{tpu_custom_call.1} parent=1 // pred_fallthru
      _
    // Predicated region
    $region22: #{tpu_custom_call.1} parent=1 // pred_check
      _
    $region23: #{tpu_custom_call.1} parent=1 // pred_check_branch
      %73 = sbr.rel (0) target = $region25
    $region24: #{tpu_custom_call.1} parent=1 // pred_region
      %74 = dma.done [#allocation4], 128
    $region25: #{tpu_custom_call.1} parent=1 // pred_fallthru
      _
    %75 = vsyncpa [#allocation3], 1
    %76 = vsyncpa [#allocation4], 1
    %77 = vsyncpa [#allocation5], 1

</llo_original>
